<compile_context>
chip_gen: v5e
topology: v5e:2x2
jax: 0.10.0
libtpu: 0.0.40
codegen_flags: <defaults>
</compile_context>

<pallas_src>
import math
import numpy as np
import jax
import jax.numpy as jnp
from jax.experimental import pallas as pl
from jax.experimental.pallas import tpu as pltpu


# ----------------------------------------------------------------------------- #
# Deterministic parameter construction (mirrors the PyTorch __init__ shapes).
# ----------------------------------------------------------------------------- #
def _norm_cdf(v):
    return 0.5 * (1.0 + math.erf(v / math.sqrt(2.0)))


def _get_gaussian_1d(kernlen, nsig):
    """1-D factor of pse_module._get_kernel: gk2d == outer(g1, g1) exactly."""
    interval = (2.0 * nsig + 1.0) / kernlen
    xs = np.linspace(-nsig - interval / 2.0, nsig + interval / 2.0, kernlen + 1)
    cdf = np.array([_norm_cdf(float(v)) for v in xs])
    kern1d = np.diff(cdf)
    s = np.sqrt(kern1d)
    g1 = s / s.sum()
    return g1.astype(np.float32)


def init_params(key, in_channels, out_channels, region_num, hidden_scale, ksize, sigma=None):
    hidden = hidden_scale * region_num
    cin, cout, r = in_channels, out_channels, region_num
    k1, k2, k3, k4 = jax.random.split(key, 4)
    params = {
        # conv_kernel[1]: Conv2d(Cin, hidden, 1)
        "W1": 0.1 * jax.random.normal(k1, (hidden, cin), jnp.float32),
        "b1": 0.1 * jax.random.normal(k2, (hidden,), jnp.float32),
        # conv_kernel[3]: Conv2d(hidden, R*Cin*Cout, 1, groups=R) -> (R, Cin*Cout, hidden//R)
        "W2": 0.1 * jax.random.normal(k3, (r, cin * cout, hidden // r), jnp.float32),
        "b2": 0.1 * jax.random.normal(k4, (r, cin * cout), jnp.float32),
        # GroupNorm affine params (PyTorch defaults: ones / zeros)
        "gamma": jnp.ones((cout,), jnp.float32),
        "beta": jnp.zeros((cout,), jnp.float32),
    }
    if sigma is None:
        sigma = 0.3 * ((ksize - 1) * 0.5 - 1) + 0.8
    g1 = _get_gaussian_1d(ksize, sigma)
    params["gk1"] = jnp.asarray(g1)                        # (ksize,)   separable factor
    params["gk"] = jnp.asarray(np.outer(g1, g1))           # (ksize,ksize) full 2-D kernel
    return params


# ----------------------------------------------------------------------------- #
# Pallas kernel: fused per-block forward (min-max norm, guide argmax, dynamic 1x1
# cross-correlation on the MXU, region select, GroupNorm + ReLU epilogue).
# ----------------------------------------------------------------------------- #
def make_sconv_kernel(cout, bblk, eps=1e-5):
    num_groups = cout // 4
    cpg = cout // num_groups

    def kernel(feat_ref, kdyn_ref, sg_ref, gb_ref, out_ref):
        hw = feat_ref.shape[-1]
        gamma = gb_ref[0]                                    # (Cout, 1)
        beta = gb_ref[1]                                     # (Cout, 1)
        ch_idx = jax.lax.broadcasted_iota(jnp.int32, (cout, 1), 0)
        inv_n = 1.0 / (cpg * hw)

        for bb in range(bblk):                               # static unroll over batch block
            sg_b = sg_ref[bb]                                # (2, HW) f32
            sig = sg_b[0:1, :]                               # sigmoid(pred)
            sa = sg_b[1:2, :]                                # gaussian-blurred sigmoid(pred)

            # min_max_norm over the spatial extent (single guide channel)
            sa_min = jnp.min(sa, keepdims=True)              # (1, 1)
            sa_max = jnp.max(sa, keepdims=True)
            sa_norm = (sa - sa_min) / (sa_max - sa_min + 1e-8)

            # holistic soft attention; argmax([hsa, 1-hsa]) == (hsa >= 0.5)
            hsa = jnp.maximum(sa_norm, sig)                  # (1, HW)
            region0 = jnp.broadcast_to(hsa >= 0.5, (cout, hw))

            # dynamic 1x1 cross-correlation: bf16 operands on the MXU, f32 accumulate
            out_all = jnp.dot(kdyn_ref[bb], feat_ref[bb],
                              preferred_element_type=jnp.float32)   # (R*Cout, HW)
            sel = jnp.where(region0, out_all[:cout, :], out_all[cout:2 * cout, :])

            # GroupNorm(Cout // 4, Cout): single-pass stats (sum / sumsq per channel,
            # folded to per-group scalars), broadcast back to per-channel scale/shift.
            ch_sum = jnp.sum(sel, axis=1, keepdims=True)     # (Cout, 1)
            ch_sq = jnp.sum(sel * sel, axis=1, keepdims=True)
            mu_c = jnp.zeros((cout, 1), jnp.float32)
            rs_c = jnp.zeros((cout, 1), jnp.float32)
            for g in range(num_groups):
                gsum = jnp.sum(ch_sum[g * cpg:(g + 1) * cpg, :])
                gsq = jnp.sum(ch_sq[g * cpg:(g + 1) * cpg, :])
                mu = gsum * inv_n
                var = gsq * inv_n - mu * mu
                rstd = jax.lax.rsqrt(var + eps)
                in_g = (ch_idx >= g * cpg) & (ch_idx < (g + 1) * cpg)
                mu_c = jnp.where(in_g, mu, mu_c)
                rs_c = jnp.where(in_g, rstd, rs_c)

            # fused affine + ReLU: one lane-dense full-tile store
            scale = rs_c * gamma                             # (Cout, 1)
            shift = beta - mu_c * scale                      # (Cout, 1)
            out_ref[bb] = jnp.maximum(sel * scale + shift, 0.0).astype(out_ref.dtype)

    return kernel


# ----------------------------------------------------------------------------- #
# Glue (plain JAX): dynamic-kernel generation, sigmoid + separable gaussian blur.
# ----------------------------------------------------------------------------- #
def _generate_dynamic_kernels(x, params, region_num, out_channels):
    """conv_kernel: AdaptiveAvgPool2d((1,1)) -> 1x1 conv -> sigmoid -> grouped 1x1 conv."""
    b = x.shape[0]
    cin = x.shape[1]
    pooled = jnp.mean(x, axis=(2, 3))                                  # (B, Cin)
    h = jax.nn.sigmoid(pooled @ params["W1"].T + params["b1"])         # (B, hidden)
    hs = params["W2"].shape[2]
    h_g = h.reshape(b, region_num, hs)                                 # grouped channels
    k_flat = jnp.einsum("brh,rch->brc", h_g, params["W2"]) + params["b2"][None]
    # channel layout c = r*(Cout*Cin) + co*Cin + ci  (matches kernel.view in xcorr_fast)
    kdyn = k_flat.reshape(b, region_num * out_channels, cin)           # (B, R*Cout, Cin)
    return kdyn


def sconv_nr_gn_forward(x, y, params, *, region_num=2, out_channels=8, ksize=5,
                        batch_block=1):
    B, Cin, H, W = x.shape
    assert B % batch_block == 0
    HW = H * W
    Cout = out_channels
    R = region_num
    pad = ksize // 2

    if x.shape[2:] != y.shape[2:]:
        # TODO(synk): jax.image.resize('bilinear') matches torch align_corners=False for
        # upsampling only (torch does not anti-alias when downsampling).
        y = jax.image.resize(y, (y.shape[0], y.shape[1], H, W), method="bilinear")

    # dynamic kernel generation (tiny matmuls -> plain JAX glue)
    kdyn = _generate_dynamic_kernels(x, params, R, Cout)               # (B, R*Cout, Cin) f32

    # guide preprocessing: sigmoid + separable gaussian blur (ksize+ksize taps, no im2col)
    sig4 = jax.nn.sigmoid(y)                                           # (B, 1, H, W)
    g1 = params["gk1"]
    kv = g1.reshape(1, 1, ksize, 1)
    kh = g1.reshape(1, 1, 1, ksize)
    dn = ("NCHW", "OIHW", "NCHW")
    sa4 = jax.lax.conv_general_dilated(sig4, kv, (1, 1), [(pad, pad), (0, 0)],
                                       dimension_numbers=dn)
    sa4 = jax.lax.conv_general_dilated(sa4, kh, (1, 1), [(0, 0), (pad, pad)],
                                       dimension_numbers=dn)
    sg = jnp.concatenate([sig4, sa4], axis=1).reshape(B, 2, HW).astype(jnp.float32)

    # MXU operands in bf16 (accumulation stays f32 inside the kernel)
    feat_f = x.reshape(B, Cin, HW).astype(jnp.bfloat16)
    kdyn_bf = kdyn.astype(jnp.bfloat16)
    gb = jnp.stack([params["gamma"], params["beta"]], axis=0).reshape(2, Cout, 1)

    Bblk = batch_block
    flops = int(2 * B * (R * Cout) * Cin * HW + 12 * B * Cout * HW)
    bytes_accessed = int(B * Cin * HW * 2 + B * R * Cout * Cin * 2
                         + B * 2 * HW * 4 + 2 * Cout * 4 + B * Cout * HW * 4)

    out = pl.pallas_call(
        make_sconv_kernel(Cout, Bblk),
        out_shape=jax.ShapeDtypeStruct((B, Cout, HW), jnp.float32),
        grid_spec=pltpu.PrefetchScalarGridSpec(
            num_scalar_prefetch=0,
            grid=(B // Bblk,),
            in_specs=[
                pl.BlockSpec((Bblk, Cin, HW), lambda b: (b, 0, 0)),        # feat (bf16)
                pl.BlockSpec((Bblk, R * Cout, Cin), lambda b: (b, 0, 0)),  # dynamic kernels (bf16)
                pl.BlockSpec((Bblk, 2, HW), lambda b: (b, 0, 0)),          # [sigmoid, blurred]
                pl.BlockSpec((2, Cout, 1), lambda b: (0, 0, 0)),           # gamma / beta
            ],
            out_specs=pl.BlockSpec((Bblk, Cout, HW), lambda b: (b, 0, 0)),
        ),
        compiler_params=pltpu.CompilerParams(dimension_semantics=("parallel",)),
        cost_estimate=pl.CostEstimate(flops=flops,
                                      transcendentals=int(B * (Cout // 4)),
                                      bytes_accessed=bytes_accessed),
    )(feat_f, kdyn_bf, sg, gb)

    return out.reshape(B, Cout, H, W)


# ----------------------------------------------------------------------------- #
# Pure-JAX reference (full f32, 2-D gaussian conv) for a sanity check.
# ----------------------------------------------------------------------------- #
def reference_forward(x, y, params, *, region_num=2, out_channels=8, ksize=5):
    B, Cin, H, W = x.shape
    Cout = out_channels
    pad = ksize // 2
    kdyn = _generate_dynamic_kernels(x, params, region_num, Cout)
    sig = jax.nn.sigmoid(y)                                            # (B,1,H,W)
    gk = params["gk"][None, None]
    sa = jax.lax.conv_general_dilated(
        sig, gk, (1, 1), [(pad, pad), (pad, pad)],
        dimension_numbers=("NCHW", "OIHW", "NCHW"))
    sa_max = sa.max(axis=(2, 3), keepdims=True)
    sa_min = sa.min(axis=(2, 3), keepdims=True)
    sa_norm = (sa - sa_min) / (sa_max - sa_min + 1e-8)
    hsa = jnp.maximum(sa_norm, sig)
    region0 = hsa >= (1.0 - hsa)
    out_all = jnp.einsum("bfc,bchw->bfhw", kdyn, x)
    sel = jnp.where(region0, out_all[:, :Cout], out_all[:, Cout:])
    G = Cout // 4
    sel_g = sel.reshape(B, G, Cout // G, H, W)
    mu = sel_g.mean(axis=(2, 3, 4), keepdims=True)
    var = jnp.square(sel_g - mu).mean(axis=(2, 3, 4), keepdims=True)
    yn = (sel_g - mu) / jnp.sqrt(var + 1e-5)
    yn = yn.reshape(B, Cout, H, W)
    yn = yn * params["gamma"][None, :, None, None] + params["beta"][None, :, None, None]
    return jnp.maximum(yn, 0.0)


# ----------------------------------------------------------------------------- #
if __name__ == "__main__":
    B, Cin, Cout, H, W = 2, 8, 8, 16, 16
    R, hidden_scale, ksize = 2, 8, 5

    key = jax.random.PRNGKey(0)
    kx, ky, kp = jax.random.split(key, 3)
    x = jax.random.normal(kx, (B, Cin, H, W), jnp.float32)
    y = jax.random.normal(ky, (B, 1, H, W), jnp.float32)
    params = init_params(kp, Cin, Cout, R, hidden_scale, ksize, sigma=None)

    ref = jax.block_until_ready(
        reference_forward(x, y, params, region_num=R, out_channels=Cout, ksize=ksize))

    # Single compile / single run to keep the demo lightweight.
    # batch_block=1 keeps the batch grid axis "parallel" (both TensorCores on v7x
    # get work); raise it on 1-TC chips (v5e/v6e) to amortize grid-step overhead.
    fwd = jax.jit(sconv_nr_gn_forward,
                  static_argnames=("region_num", "out_channels", "ksize", "batch_block"))
    out = jax.block_until_ready(
        fwd(x, y, params, region_num=R, out_channels=Cout, ksize=ksize, batch_block=1))

    assert out.shape == (B, Cout, H, W)
    assert bool(jnp.all(jnp.isfinite(out)))
    err = float(jnp.max(jnp.abs(out - ref)))
    assert jnp.allclose(out, ref, atol=2e-2, rtol=2e-2), err

    print("KERNEL_OK")
</pallas_src>

<mosaic_0001>
module attributes {stable_mosaic.version = 11 : i64} {
  func.func @kernel(%arg0: i32, %arg1: memref<1x8x256xbf16, #tpu.memory_space<vmem>>, %arg2: memref<1x16x8xbf16, #tpu.memory_space<vmem>>, %arg3: memref<1x2x256xf32, #tpu.memory_space<vmem>>, %arg4: memref<2x8x1xf32, #tpu.memory_space<vmem>>, %arg5: memref<1x8x256xf32, #tpu.memory_space<vmem>>) attributes {dimension_semantics = [#tpu.dimension_semantics<parallel>], iteration_bounds = array<i64: 2>, scalar_prefetch = 0 : i64, scratch_operands = 0 : i64, tpu.core_type = #tpu.core_type<tc>, window_params = [{transform_indices = @transform_0, window_bounds = array<i64: 1, 8, 256>}, {transform_indices = @transform_1, window_bounds = array<i64: 1, 16, 8>}, {transform_indices = @transform_2, window_bounds = array<i64: 1, 2, 256>}, {pipeline_mode = #tpu.pipeline_mode<synchronous>, transform_indices = @transform_3, window_bounds = array<i64: 2, 8, 1>}, {transform_indices = @transform_4, window_bounds = array<i64: 1, 8, 256>}]} {
    %c0 = arith.constant 0 : index
    %c0_0 = arith.constant 0 : index
    %c0_1 = arith.constant 0 : index
    %0 = vector.load %arg4[%c0, %c0_0, %c0_1] : memref<2x8x1xf32, #tpu.memory_space<vmem>>, vector<1x8x1xf32>
    %1 = vector.shape_cast %0 : vector<1x8x1xf32> to vector<8x1xf32>
    %c1 = arith.constant 1 : index
    %c0_2 = arith.constant 0 : index
    %c0_3 = arith.constant 0 : index
    %2 = vector.load %arg4[%c1, %c0_2, %c0_3] : memref<2x8x1xf32, #tpu.memory_space<vmem>>, vector<1x8x1xf32>
    %3 = vector.shape_cast %2 : vector<1x8x1xf32> to vector<8x1xf32>
    %4 = tpu.iota {dimensions = array<i32: 0>} : vector<8x1xi32>
    %c0_4 = arith.constant 0 : index
    %c0_5 = arith.constant 0 : index
    %c0_6 = arith.constant 0 : index
    %5 = vector.load %arg3[%c0_4, %c0_5, %c0_6] : memref<1x2x256xf32, #tpu.memory_space<vmem>>, vector<1x2x256xf32>
    %6 = vector.shape_cast %5 : vector<1x2x256xf32> to vector<2x256xf32>
    %7 = vector.extract_strided_slice %6 {offsets = [0, 0], sizes = [1, 256], strides = [1, 1]} : vector<2x256xf32> to vector<1x256xf32>
    %8 = vector.extract_strided_slice %6 {offsets = [1, 0], sizes = [1, 256], strides = [1, 1]} : vector<2x256xf32> to vector<1x256xf32>
    %9 = vector.shape_cast %8 : vector<1x256xf32> to vector<1x1x256xf32>
    %cst = arith.constant dense<0x7F800000> : vector<1xf32>
    %10 = vector.multi_reduction <minimumf>, %9, %cst [1, 2] : vector<1x1x256xf32> to vector<1xf32>
    %11 = vector.shape_cast %10 : vector<1xf32> to vector<1x1x1xf32>
    %12 = vector.extract %11[0, 0, 0] : f32 from vector<1x1x1xf32>
    %13 = vector.broadcast %12 : f32 to vector<1x1xf32>
    %14 = vector.shape_cast %8 : vector<1x256xf32> to vector<1x1x256xf32>
    %cst_7 = arith.constant dense<0xFF800000> : vector<1xf32>
    %15 = vector.multi_reduction <maximumf>, %14, %cst_7 [1, 2] : vector<1x1x256xf32> to vector<1xf32>
    %16 = vector.shape_cast %15 : vector<1xf32> to vector<1x1x1xf32>
    %17 = vector.extract %16[0, 0, 0] : f32 from vector<1x1x1xf32>
    %18 = vector.broadcast %17 : f32 to vector<1x1xf32>
    %19 = vector.broadcast %13 : vector<1x1xf32> to vector<1x256xf32>
    %20 = arith.subf %8, %19 : vector<1x256xf32>
    %21 = arith.subf %18, %13 : vector<1x1xf32>
    %cst_8 = arith.constant 9.99999993E-9 : f32
    %22 = vector.broadcast %cst_8 : f32 to vector<1x1xf32>
    %23 = arith.addf %21, %22 : vector<1x1xf32>
    %24 = vector.broadcast %23 : vector<1x1xf32> to vector<1x256xf32>
    %25 = arith.divf %20, %24 : vector<1x256xf32>
    %26 = arith.maximumf %25, %7 : vector<1x256xf32>
    %cst_9 = arith.constant 5.000000e-01 : f32
    %27 = vector.broadcast %cst_9 : f32 to vector<1x256xf32>
    %28 = arith.cmpf oge, %26, %27 : vector<1x256xf32>
    %29 = vector.shape_cast %28 : vector<1x256xi1> to vector<1x256xi1>
    %30 = vector.broadcast %29 : vector<1x256xi1> to vector<8x256xi1>
    %c0_10 = arith.constant 0 : index
    %c0_11 = arith.constant 0 : index
    %c0_12 = arith.constant 0 : index
    %31 = vector.load %arg2[%c0_10, %c0_11, %c0_12] : memref<1x16x8xbf16, #tpu.memory_space<vmem>>, vector<1x16x8xbf16>
    %32 = vector.shape_cast %31 : vector<1x16x8xbf16> to vector<16x8xbf16>
    %c0_13 = arith.constant 0 : index
    %c0_14 = arith.constant 0 : index
    %c0_15 = arith.constant 0 : index
    %33 = vector.load %arg1[%c0_13, %c0_14, %c0_15] : memref<1x8x256xbf16, #tpu.memory_space<vmem>>, vector<1x8x256xbf16>
    %34 = vector.shape_cast %33 : vector<1x8x256xbf16> to vector<8x256xbf16>
    %cst_16 = arith.constant dense<0.000000e+00> : vector<16x256xf32>
    %35 = tpu.matmul %32, %34, %cst_16 {dimension_numbers = #tpu.dot_dimension_numbers<[1], [0], [0], [1], [0, 0, 1, 1], [], []>} : vector<16x8xbf16>, vector<8x256xbf16>, vector<16x256xf32> -> vector<16x256xf32>
    %36 = vector.extract_strided_slice %35 {offsets = [0, 0], sizes = [8, 256], strides = [1, 1]} : vector<16x256xf32> to vector<8x256xf32>
    %37 = vector.extract_strided_slice %35 {offsets = [8, 0], sizes = [8, 256], strides = [1, 1]} : vector<16x256xf32> to vector<8x256xf32>
    %38 = arith.select %30, %36, %37 : vector<8x256xi1>, vector<8x256xf32>
    %cst_17 = arith.constant dense<0.000000e+00> : vector<8xf32>
    %39 = vector.multi_reduction <add>, %38, %cst_17 [1] : vector<8x256xf32> to vector<8xf32>
    %40 = vector.shape_cast %39 : vector<8xf32> to vector<8x1xf32>
    %41 = arith.mulf %38, %38 : vector<8x256xf32>
    %cst_18 = arith.constant dense<0.000000e+00> : vector<8xf32>
    %42 = vector.multi_reduction <add>, %41, %cst_18 [1] : vector<8x256xf32> to vector<8xf32>
    %43 = vector.shape_cast %42 : vector<8xf32> to vector<8x1xf32>
    %cst_19 = arith.constant 0.000000e+00 : f32
    %44 = vector.broadcast %cst_19 : f32 to vector<8x1xf32>
    %cst_20 = arith.constant 0.000000e+00 : f32
    %45 = vector.broadcast %cst_20 : f32 to vector<8x1xf32>
    %46 = vector.extract_strided_slice %40 {offsets = [0, 0], sizes = [4, 1], strides = [1, 1]} : vector<8x1xf32> to vector<4x1xf32>
    %47 = vector.shape_cast %46 : vector<4x1xf32> to vector<1x4x1xf32>
    %cst_21 = arith.constant dense<0.000000e+00> : vector<1xf32>
    %48 = vector.multi_reduction <add>, %47, %cst_21 [1, 2] : vector<1x4x1xf32> to vector<1xf32>
    %49 = vector.shape_cast %48 : vector<1xf32> to vector<1x1x1xf32>
    %50 = vector.extract %49[0, 0, 0] : f32 from vector<1x1x1xf32>
    %51 = vector.extract_strided_slice %43 {offsets = [0, 0], sizes = [4, 1], strides = [1, 1]} : vector<8x1xf32> to vector<4x1xf32>
    %52 = vector.shape_cast %51 : vector<4x1xf32> to vector<1x4x1xf32>
    %cst_22 = arith.constant dense<0.000000e+00> : vector<1xf32>
    %53 = vector.multi_reduction <add>, %52, %cst_22 [1, 2] : vector<1x4x1xf32> to vector<1xf32>
    %54 = vector.shape_cast %53 : vector<1xf32> to vector<1x1x1xf32>
    %55 = vector.extract %54[0, 0, 0] : f32 from vector<1x1x1xf32>
    %cst_23 = arith.constant 9.765625E-4 : f32
    %56 = arith.mulf %50, %cst_23 : f32
    %cst_24 = arith.constant 9.765625E-4 : f32
    %57 = arith.mulf %55, %cst_24 : f32
    %58 = arith.mulf %56, %56 : f32
    %59 = arith.subf %57, %58 : f32
    %cst_25 = arith.constant 9.99999974E-6 : f32
    %60 = arith.addf %59, %cst_25 : f32
    %61 = math.rsqrt %60 : f32
    %c0_i32 = arith.constant 0 : i32
    %62 = vector.broadcast %c0_i32 : i32 to vector<8x1xi32>
    %63 = arith.cmpi sge, %4, %62 : vector<8x1xi32>
    %c4_i32 = arith.constant 4 : i32
    %64 = vector.broadcast %c4_i32 : i32 to vector<8x1xi32>
    %65 = arith.cmpi slt, %4, %64 : vector<8x1xi32>
    %66 = arith.andi %63, %65 : vector<8x1xi1>
    %67 = vector.broadcast %56 : f32 to vector<8x1xf32>
    %68 = arith.select %66, %67, %44 : vector<8x1xi1>, vector<8x1xf32>
    %69 = vector.broadcast %61 : f32 to vector<8x1xf32>
    %70 = arith.select %66, %69, %45 : vector<8x1xi1>, vector<8x1xf32>
    %71 = vector.extract_strided_slice %40 {offsets = [4, 0], sizes = [4, 1], strides = [1, 1]} : vector<8x1xf32> to vector<4x1xf32>
    %72 = vector.shape_cast %71 : vector<4x1xf32> to vector<1x4x1xf32>
    %cst_26 = arith.constant dense<0.000000e+00> : vector<1xf32>
    %73 = vector.multi_reduction <add>, %72, %cst_26 [1, 2] : vector<1x4x1xf32> to vector<1xf32>
    %74 = vector.shape_cast %73 : vector<1xf32> to vector<1x1x1xf32>
    %75 = vector.extract %74[0, 0, 0] : f32 from vector<1x1x1xf32>
    %76 = vector.extract_strided_slice %43 {offsets = [4, 0], sizes = [4, 1], strides = [1, 1]} : vector<8x1xf32> to vector<4x1xf32>
    %77 = vector.shape_cast %76 : vector<4x1xf32> to vector<1x4x1xf32>
    %cst_27 = arith.constant dense<0.000000e+00> : vector<1xf32>
    %78 = vector.multi_reduction <add>, %77, %cst_27 [1, 2] : vector<1x4x1xf32> to vector<1xf32>
    %79 = vector.shape_cast %78 : vector<1xf32> to vector<1x1x1xf32>
    %80 = vector.extract %79[0, 0, 0] : f32 from vector<1x1x1xf32>
    %cst_28 = arith.constant 9.765625E-4 : f32
    %81 = arith.mulf %75, %cst_28 : f32
    %cst_29 = arith.constant 9.765625E-4 : f32
    %82 = arith.mulf %80, %cst_29 : f32
    %83 = arith.mulf %81, %81 : f32
    %84 = arith.subf %82, %83 : f32
    %cst_30 = arith.constant 9.99999974E-6 : f32
    %85 = arith.addf %84, %cst_30 : f32
    %86 = math.rsqrt %85 : f32
    %c4_i32_31 = arith.constant 4 : i32
    %87 = vector.broadcast %c4_i32_31 : i32 to vector<8x1xi32>
    %88 = arith.cmpi sge, %4, %87 : vector<8x1xi32>
    %c8_i32 = arith.constant 8 : i32
    %89 = vector.broadcast %c8_i32 : i32 to vector<8x1xi32>
    %90 = arith.cmpi slt, %4, %89 : vector<8x1xi32>
    %91 = arith.andi %88, %90 : vector<8x1xi1>
    %92 = vector.broadcast %81 : f32 to vector<8x1xf32>
    %93 = arith.select %91, %92, %68 : vector<8x1xi1>, vector<8x1xf32>
    %94 = vector.broadcast %86 : f32 to vector<8x1xf32>
    %95 = arith.select %91, %94, %70 : vector<8x1xi1>, vector<8x1xf32>
    %96 = arith.mulf %95, %1 : vector<8x1xf32>
    %97 = arith.mulf %93, %96 : vector<8x1xf32>
    %98 = arith.subf %3, %97 : vector<8x1xf32>
    %99 = vector.broadcast %96 : vector<8x1xf32> to vector<8x256xf32>
    %100 = arith.mulf %38, %99 : vector<8x256xf32>
    %101 = vector.broadcast %98 : vector<8x1xf32> to vector<8x256xf32>
    %102 = arith.addf %100, %101 : vector<8x256xf32>
    %cst_32 = arith.constant 0.000000e+00 : f32
    %103 = vector.broadcast %cst_32 : f32 to vector<8x256xf32>
    %104 = arith.maximumf %102, %103 : vector<8x256xf32>
    %c0_33 = arith.constant 0 : index
    %c0_34 = arith.constant 0 : index
    %c0_35 = arith.constant 0 : index
    %105 = vector.load %arg5[%c0_33, %c0_34, %c0_35] : memref<1x8x256xf32, #tpu.memory_space<vmem>>, vector<1x8x256xf32>
    %106 = vector.shape_cast %105 : vector<1x8x256xf32> to vector<8x256xf32>
    %107 = vector.shape_cast %104 : vector<8x256xf32> to vector<1x8x256xf32>
    tpu.vector_store %arg5[%c0_33, %c0_34, %c0_35], %107 {strides = array<i32>} : memref<1x8x256xf32, #tpu.memory_space<vmem>>, vector<1x8x256xf32>,
    return
  }
  func.func @transform_0(%arg0: i32) -> (i32, i32, i32) {
    %c0_i32 = arith.constant 0 : i32
    %c0_i32_0 = arith.constant 0 : i32
    %c0_i32_1 = arith.constant 0 : i32
    return %arg0, %c0_i32, %c0_i32_0 : i32, i32, i32
  }
  func.func @transform_1(%arg0: i32) -> (i32, i32, i32) {
    %c0_i32 = arith.constant 0 : i32
    %c0_i32_0 = arith.constant 0 : i32
    %c0_i32_1 = arith.constant 0 : i32
    return %arg0, %c0_i32, %c0_i32_0 : i32, i32, i32
  }
  func.func @transform_2(%arg0: i32) -> (i32, i32, i32) {
    %c0_i32 = arith.constant 0 : i32
    %c0_i32_0 = arith.constant 0 : i32
    %c0_i32_1 = arith.constant 0 : i32
    return %arg0, %c0_i32, %c0_i32_0 : i32, i32, i32
  }
  func.func @transform_3(%arg0: i32) -> (i32, i32, i32) {
    %c0_i32 = arith.constant 0 : i32
    %c0_i32_0 = arith.constant 0 : i32
    %c0_i32_1 = arith.constant 0 : i32
    %c0_i32_2 = arith.constant 0 : i32
    return %c0_i32, %c0_i32_0, %c0_i32_1 : i32, i32, i32
  }
  func.func @transform_4(%arg0: i32) -> (i32, i32, i32) {
    %c0_i32 = arith.constant 0 : i32
    %c0_i32_0 = arith.constant 0 : i32
    %c0_i32_1 = arith.constant 0 : i32
    return %arg0, %c0_i32, %c0_i32_0 : i32, i32, i32
  }
}

</mosaic_0001>

<llo_original>
// kernel: sconv_nr_gn_forward.1
$region0: #{sconv_nr_gn_forward.1}
  #allocation0 [shape = 'u32[]', space=smem, size = 0x4, offset = 0x4, fixed_abs, tag = 'smem constant byte address 0x4 - core index']
  #allocation1 [shape = 'u32[72,128]{1,0:T(1,128)}', space=vmem, size = 0x9000, scoped, tag = 'internal scratch']
  %s0 = inlined_call_operand.vmem [shape: bf16[2,8,256], index: 0, kind: input, shape index: {}]
  %s1 = inlined_call_operand.vmem [shape: bf16[2,16,8], index: 1, kind: input, shape index: {}]
  %s2 = inlined_call_operand.vmem [shape: f32[2,2,256], index: 2, kind: input, shape index: {}]
  %s3 = inlined_call_operand.vmem [shape: f32[2,8,1], index: 3, kind: input, shape index: {}]
  %s4 = inlined_call_operand.vmem [shape: f32[2,8,256], index: 4, kind: output, shape index: {}]
  %s5 = sld [smem:[#allocation0]]
  $region49: #{sconv_nr_gn_forward.1} parent=0
    _
  %s7 = ssub.s32 1, %s5
  %s8 = scalar_select 0, %s7, %s5
  loop: start=0, step=1, limit=4
  $region2: #{sconv_nr_gn_forward.1} parent=0 // loop_pre_header
    _
  $region3: #{sconv_nr_gn_forward.1} parent=0 // loop_header
    %s10 = sphi 0, %s14
    %p11 = scmp.ge.s32.totalorder %s10, 4
    %s20 = sphi 0, %s22
    %s23 = sphi 0, %s20
    %s24 = sphi 0, %s23
    %s40 = sphi 0, %s24
    %s46 = sphi 0, %s48
    %s49 = sphi 0, %s46
    %s50 = sphi 0, %s49
    %s66 = sphi 0, %s50
    %s72 = sphi 0, %s74
    %s75 = sphi 0, %s72
    %s76 = sphi 0, %s75
    %s92 = sphi 0, %s76
    %s96 = sphi 0, %s96
    %s98 = sphi 0, %s96
    %s99 = sphi 0, %s98
    %s113 = sphi 0, %s99
    %s119 = sphi 0, %s121
    %s122 = sphi 0, %s119
    %s123 = sphi 0, %s122
    %s139 = sphi 0, %s123
  $region4: #{sconv_nr_gn_forward.1} parent=0 // loop_header_branch
    %13 = sbr.rel (%p11) target = $region8
  $region5: #{sconv_nr_gn_forward.1} parent=0 // loop_body
    %s15 = ssub.s32 %s10, 1
    %s16 = ssub.s32 %s10, 2
    %s17 = sadd.s32 %s10, 1
    %s18 = ssub.s32 %s10, %s17
    %p19 = scmp.eq.s32.totalorder %s18, 0
    %s21 = sadd.s32 %s20, 1
    %s22 = scalar_select %p19, %s20, %s21
    %p25 = pneg %p19
    %p26 = scmp.eq.s32.totalorder %s10, 1
    %p27 = por %p25, %p26
    %p28 = scmp.ne.s32.totalorder %s20, %s23
    %p29 = scmp.eq.s32.totalorder %s10, 0
    %p30 = por %p28, %p29
    %p31 = scmp.ne.s32.totalorder %s20, %s23
    %p32 = scmp.eq.s32.totalorder %s15, 1
    %p33 = por %p31, %p32
    %p34 = scmp.ne.s32.totalorder %s23, %s24
    %p35 = scmp.eq.s32.totalorder %s15, 0
    %p36 = por %p34, %p35
    %p37 = scmp.ne.s32.totalorder %s23, %s24
    %p38 = scmp.eq.s32.totalorder %s16, 1
    %p39 = por %p37, %p38
    %p41 = scmp.ne.s32.totalorder %s24, %s40
    %p42 = scmp.eq.s32.totalorder %s16, 0
    %p43 = por %p41, %p42
    %s44 = ssub.s32 %s10, %s17
    %p45 = scmp.eq.s32.totalorder %s44, 0
    %s47 = sadd.s32 %s46, 1
    %s48 = scalar_select %p45, %s46, %s47
    %p51 = pneg %p45
    %p52 = scmp.eq.s32.totalorder %s10, 1
    %p53 = por %p51, %p52
    %p54 = scmp.ne.s32.totalorder %s46, %s49
    %p55 = scmp.eq.s32.totalorder %s10, 0
    %p56 = por %p54, %p55
    %p57 = scmp.ne.s32.totalorder %s46, %s49
    %p58 = scmp.eq.s32.totalorder %s15, 1
    %p59 = por %p57, %p58
    %p60 = scmp.ne.s32.totalorder %s49, %s50
    %p61 = scmp.eq.s32.totalorder %s15, 0
    %p62 = por %p60, %p61
    %p63 = scmp.ne.s32.totalorder %s49, %s50
    %p64 = scmp.eq.s32.totalorder %s16, 1
    %p65 = por %p63, %p64
    %p67 = scmp.ne.s32.totalorder %s50, %s66
    %p68 = scmp.eq.s32.totalorder %s16, 0
    %p69 = por %p67, %p68
    %s70 = ssub.s32 %s10, %s17
    %p71 = scmp.eq.s32.totalorder %s70, 0
    %s73 = sadd.s32 %s72, 1
    %s74 = scalar_select %p71, %s72, %s73
    %p77 = pneg %p71
    %p78 = scmp.eq.s32.totalorder %s10, 1
    %p79 = por %p77, %p78
    %p80 = scmp.ne.s32.totalorder %s72, %s75
    %p81 = scmp.eq.s32.totalorder %s10, 0
    %p82 = por %p80, %p81
    %p83 = scmp.ne.s32.totalorder %s72, %s75
    %p84 = scmp.eq.s32.totalorder %s15, 1
    %p85 = por %p83, %p84
    %p86 = scmp.ne.s32.totalorder %s75, %s76
    %p87 = scmp.eq.s32.totalorder %s15, 0
    %p88 = por %p86, %p87
    %p89 = scmp.ne.s32.totalorder %s75, %s76
    %p90 = scmp.eq.s32.totalorder %s16, 1
    %p91 = por %p89, %p90
    %p93 = scmp.ne.s32.totalorder %s76, %s92
    %p94 = scmp.eq.s32.totalorder %s16, 0
    %p95 = por %p93, %p94
    %s97 = sadd.s32 %s96, 1
    %p100 = scmp.eq.s32.totalorder %s10, 1
    %p101 = scmp.ne.s32.totalorder %s96, %s98
    %p102 = scmp.eq.s32.totalorder %s10, 0
    %p103 = por %p101, %p102
    %p104 = scmp.ne.s32.totalorder %s96, %s98
    %p105 = scmp.eq.s32.totalorder %s15, 1
    %p106 = por %p104, %p105
    %p107 = scmp.ne.s32.totalorder %s98, %s99
    %p108 = scmp.eq.s32.totalorder %s15, 0
    %p109 = por %p107, %p108
    %p110 = scmp.ne.s32.totalorder %s98, %s99
    %p111 = scmp.eq.s32.totalorder %s16, 1
    %p112 = por %p110, %p111
    %p114 = scmp.ne.s32.totalorder %s99, %s113
    %p115 = scmp.eq.s32.totalorder %s16, 0
    %p116 = por %p114, %p115
    %s117 = ssub.s32 %s10, %s17
    %p118 = scmp.eq.s32.totalorder %s117, 0
    %s120 = sadd.s32 %s119, 1
    %s121 = scalar_select %p118, %s119, %s120
    %p124 = pneg %p118
    %p125 = scmp.eq.s32.totalorder %s10, 1
    %p126 = por %p124, %p125
    %p127 = scmp.ne.s32.totalorder %s119, %s122
    %p128 = scmp.eq.s32.totalorder %s10, 0
    %p129 = por %p127, %p128
    %p130 = scmp.ne.s32.totalorder %s119, %s122
    %p131 = scmp.eq.s32.totalorder %s15, 1
    %p132 = por %p130, %p131
    %p133 = scmp.ne.s32.totalorder %s122, %s123
    %p134 = scmp.eq.s32.totalorder %s15, 0
    %p135 = por %p133, %p134
    %p136 = scmp.ne.s32.totalorder %s122, %s123
    %p137 = scmp.eq.s32.totalorder %s16, 1
    %p138 = por %p136, %p137
    %p140 = scmp.ne.s32.totalorder %s123, %s139
    %p141 = scmp.eq.s32.totalorder %s16, 0
    %p142 = por %p140, %p141
    %p143 = scmp.le.s32.totalorder 1, %s10
    %p144 = scmp.lt.s32.totalorder %s10, 3
    %p145 = pnand %p143, %p144
    %p146 = pneg %p145
    // Predicated region
    $region9: #{sconv_nr_gn_forward.1} parent=5 // pred_check
      _
    $region10: #{sconv_nr_gn_forward.1} parent=5 // pred_check_branch
      %148 = sbr.rel (%p145) target = $region12
    $region11: #{sconv_nr_gn_forward.1} parent=5 // pred_region
      %s149 = ssub.s32 %s10, 1
      // Predicated region
      $region13: #{sconv_nr_gn_forward.1} parent=11 // pred_check
        %p150 = pneg %p109
      $region14: #{sconv_nr_gn_forward.1} parent=11 // pred_check_branch
        %152 = sbr.rel (%p150) target = $region16
      $region15: #{sconv_nr_gn_forward.1} parent=11 // pred_region
        _
      $region16: #{sconv_nr_gn_forward.1} parent=11 // pred_fallthru
        _
    $region12: #{sconv_nr_gn_forward.1} parent=5 // pred_fallthru
      _
    %p153 = scmp.lt.s32.totalorder %s10, 2
    // Predicated region
    $region17: #{sconv_nr_gn_forward.1} parent=5 // pred_check
      %p154 = pneg %p153
    $region18: #{sconv_nr_gn_forward.1} parent=5 // pred_check_branch
      %156 = sbr.rel (%p154) target = $region20
    $region19: #{sconv_nr_gn_forward.1} parent=5 // pred_region
      // Predicated region
      $region21: #{sconv_nr_gn_forward.1} parent=19 // pred_check
        %p157 = pneg %p30
      $region22: #{sconv_nr_gn_forward.1} parent=19 // pred_check_branch
        %159 = sbr.rel (%p157) target = $region24
      $region23: #{sconv_nr_gn_forward.1} parent=19 // pred_region
        %p160 = scmp.lt.s32.totalorder %s10, 1
        %s161 = scalar_select %p160, %s10, 1
        %s162 = smul.addr %s161, 2
        %s163 = smul.addr %s162, 4
        %s164 = scalar_lea.vmem %s0, %s163
      $region24: #{sconv_nr_gn_forward.1} parent=19 // pred_fallthru
        _
      // Predicated region
      $region25: #{sconv_nr_gn_forward.1} parent=19 // pred_check
        %p165 = pneg %p56
      $region26: #{sconv_nr_gn_forward.1} parent=19 // pred_check_branch
        %167 = sbr.rel (%p165) target = $region28
      $region27: #{sconv_nr_gn_forward.1} parent=19 // pred_region
        %p168 = scmp.lt.s32.totalorder %s10, 1
        %s169 = scalar_select %p168, %s10, 1
        %s170 = smul.addr %s169, 2
        %s171 = smul.addr %s170, 4
        %s172 = scalar_lea.vmem %s1, %s171
      $region28: #{sconv_nr_gn_forward.1} parent=19 // pred_fallthru
        _
      // Predicated region
      $region29: #{sconv_nr_gn_forward.1} parent=19 // pred_check
        %p173 = pneg %p82
      $region30: #{sconv_nr_gn_forward.1} parent=19 // pred_check_branch
        %175 = sbr.rel (%p173) target = $region32
      $region31: #{sconv_nr_gn_forward.1} parent=19 // pred_region
        %p176 = scmp.lt.s32.totalorder %s10, 1
        %s177 = scalar_select %p176, %s10, 1
        %s178 = smul.addr %s177, 2
        %s179 = smul.addr %s178, 2
        %s180 = scalar_lea.vmem %s2, %s179
      $region32: #{sconv_nr_gn_forward.1} parent=19 // pred_fallthru
        _
    $region20: #{sconv_nr_gn_forward.1} parent=5 // pred_fallthru
      _
    %p181 = scmp.le.s32.totalorder 1, %s10
    %p182 = scmp.lt.s32.totalorder %s10, 3
    %p183 = pnand %p181, %p182
    %p184 = pneg %p183
    // Predicated region
    $region33: #{sconv_nr_gn_forward.1} parent=5 // pred_check
      _
    $region34: #{sconv_nr_gn_forward.1} parent=5 // pred_check_branch
      %186 = sbr.rel (%p183) target = $region36
    $region35: #{sconv_nr_gn_forward.1} parent=5 // pred_region
      %s187 = ssub.s32 %s10, 1
      %p188 = scmp.lt.s32.totalorder %s15, 1
      %s189 = scalar_select %p188, %s15, 1
      %s190 = smul.addr %s189, 2
      %s191 = smul.addr %s190, 4
      %s192 = scalar_lea.vmem %s0, %s191
      %p193 = pneg %p36
      %p194 = pneg %p33
      %p195 = scmp.lt.s32.totalorder %s15, 1
      %s196 = scalar_select %p195, %s15, 1
      %s197 = smul.addr %s196, 2
      %s198 = smul.addr %s197, 4
      %s199 = scalar_lea.vmem %s1, %s198
      %p200 = pneg %p62
      %p201 = pneg %p59
      %p202 = scmp.lt.s32.totalorder %s15, 1
      %s203 = scalar_select %p202, %s15, 1
      %s204 = smul.addr %s203, 2
      %s205 = smul.addr %s204, 2
      %s206 = scalar_lea.vmem %s2, %s205
      %p207 = pneg %p88
      %p208 = pneg %p85
      %p209 = pneg %p109
      %p210 = pneg %p106
      %p211 = pneg %p135
      %p212 = pneg %p132
      %p213 = scmp.lt.s32.totalorder %s15, 1
      %s214 = scalar_select %p213, %s15, 1
      %s215 = smul.addr %s214, 2
      %s216 = smul.addr %s215, 8
      %s217 = scalar_lea.vmem %s4, %s216
      %p218 = scmp.lt.s32.totalorder %s15, 1
      %s219 = scalar_select %p218, %s15, 1
      %s220 = smul.addr %s219, 2
      %s221 = smul.addr %s220, 4
      %s222 = scalar_lea.vmem %s0, %s221
      %p223 = scmp.lt.s32.totalorder %s15, 1
      %s224 = scalar_select %p223, %s15, 1
      %s225 = smul.addr %s224, 2
      %s226 = smul.addr %s225, 4
      %s227 = scalar_lea.vmem %s1, %s226
      %p228 = scmp.lt.s32.totalorder %s15, 1
      %s229 = scalar_select %p228, %s15, 1
      %s230 = smul.addr %s229, 2
      %s231 = smul.addr %s230, 2
      %s232 = scalar_lea.vmem %s2, %s231
      %p233 = scmp.lt.s32.totalorder %s15, 1
      %s234 = scalar_select %p233, %s15, 1
      %s235 = smul.addr %s234, 2
      %s236 = smul.addr %s235, 8
      %s237 = scalar_lea.vmem %s4, %s236
      %v239 = vld [vmem:[%s3] sm:$0xff]
      %s240 = scalar_lea.vmem %s3, 8
      %v241 = vld [vmem:[%s240] sm:$0xff]
      %v242 = vlaneseq
      %v243 = vshrl.u32 %v242, 7
      %v244 = vld [vmem:[%s232] sm:$0xf]
      %v246 = vperm.slane %v244, 1
      %v247 = vperm.slane %v244, 3
      %vm250 = vcmask 1041409
      %v251 = vsel %vm250, %v246, inf
      %v252 = vsel %vm250, %v247, inf
      %v253 = vmin.f32 %v251, %v252
      %254 = vmin.xlane.f32.xlu0 %v253
      %v255 = vpop.xlane.xlu0 %254
      %v256 = vrot.slane %v255, 4
      %v257 = vmin.f32 %v255, %v256
      %v258 = vrot.slane %v257, 2
      %v259 = vmin.f32 %v257, %v258
      %v260 = vrot.slane %v259, 1
      %v261 = vmin.f32 %v259, %v260
      %s262 = vtos %v261
      %v263 = vstv %s262
      %v264 = vsel %vm250, %v246, -inf
      %v265 = vsel %vm250, %v247, -inf
      %v266 = vmax.f32 %v264, %v265
      %267 = vmax.xlane.f32.xlu0 %v266
      %v268 = vpop.xlane.xlu0 %267
      %v269 = vrot.slane %v268, 4
      %v270 = vmax.f32 %v268, %v269
      %v271 = vrot.slane %v270, 2
      %v272 = vmax.f32 %v270, %v271
      %v273 = vrot.slane %v272, 1
      %v274 = vmax.f32 %v272, %v273
      %s275 = vtos %v274
      %v276 = vstv %s275
      %v277 = vsub.f32 %v244, %v263
      %v278 = vsub.f32 %v276, %v263
      %v279 = vadd.f32 %v278, 1e-08
      %v280 = vrcp.pop %v279
      %v281 = vmul.f32 %v279, %v280
      %v282 = vsub.f32 1.0, %v281
      %v283 = vmul.f32 %v280, %v282
      %v284 = vadd.f32 %v280, %v283
      %vm285 = vweird.f32 %v279
      %vm286 = vweird.f32 %v280
      %vm287 = vmor %vm285, %vm286
      %v288 = vsel %vm287, %v280, %v284
      %v289 = vand.u32 2147483647, %v279
      %vm290 = vcmp.eq.f32.partialorder %v289, 8.507059e+37
      %v291 = vand.u32 %v279, 2147483648
      %v292 = vor.u32 1.1754944e-38, %v291
      %v293 = vsel %vm290, %v292, %v288
      %v294 = vmul.f32 %v277, %v293
      %v295 = vrot.slane %v244, 7
      %v297 = vmax.f32 %v294, %v295
      %vm298 = vcmp.ge.f32.partialorder %v297, 0.5
      %v299 = vsel %vm298, 1, 0
      %v300 = vperm.slane %v299, 1
      %v301 = vperm.slane %v299, 3
      %v302 = vperm.slane %v300, 1
      %v303 = vperm.slane %v301, 1
      %vm304 = vcmp.eq.s32.totalorder %v302, 1
      %vm305 = vcmp.eq.s32.totalorder %v303, 1
      %v306 = vld [vmem:[%s227] sm:$0xf]
      %v307 = vld [vmem:[%s227 + $0x4] sm:$0xf]
      %v308 = vld [vmem:[%s222] sm:$0xff]
      %v311 = vunpack.c.l.b16 %v306
      %v312 = vunpack.c.l.b16 %v307
      %v313 = vpack.c.b16 %v312, %v311
      %v315 = vunpack.c.l.b16 %v308
      %v316 = vunpack.c.h.b16 %v308
      %v317 = vpack.c.b16 %v315, %v315
      %v318 = vpack.c.b16 %v316, %v316
      %vm319 = vcmask 64512
      %v321 = vsel %vm319, %v313, 0
      %vm323 = vcmask 1043456
      %v325 = vsel %vm323, %v317, 0
      %v328 = vsel %vm323, %v318, 0
      %330 = vmatpush.bf16.msra.mxu0 0
      %331 = vmatpush.bf16.msra.mxu0 0
      %332 = vmatpush.bf16.msra.mxu0 0
      %333 = vmatpush.bf16.msra.mxu0 0
      %334 = vmatpush.bf16.msra.mxu0 0
      %335 = vmatpush.bf16.msra.mxu0 0
      %336 = vmatpush.bf16.msra.mxu0 0
      %337 = vmatpush.bf16.msra.mxu0 %v325
      %338 = vmatmul.bf16.gmra.mxu0 %v321
      %v339 = vpop.f32.mrf.mxu0
      %v340 = vadd.f32 0.0, %v339
      %v341 = vpop.f32.mrf.mxu0
      %v342 = vadd.f32 0.0, %v341
      %343 = vdwg.mxu0
      %344 = vmatpush.bf16.msra.mxu0 0
      %345 = vmatpush.bf16.msra.mxu0 0
      %346 = vmatpush.bf16.msra.mxu0 0
      %347 = vmatpush.bf16.msra.mxu0 0
      %348 = vmatpush.bf16.msra.mxu0 0
      %349 = vmatpush.bf16.msra.mxu0 0
      %350 = vmatpush.bf16.msra.mxu0 0
      %351 = vmatpush.bf16.msra.mxu0 %v328
      %352 = vmatmul.bf16.gmra.mxu0 %v321
      %v353 = vpop.f32.mrf.mxu0
      %v354 = vadd.f32 0.0, %v353
      %v355 = vpop.f32.mrf.mxu0
      %v356 = vadd.f32 0.0, %v355
      %357 = vdwg.mxu0
      %v358 = vsel %vm304, %v340, %v342
      %v359 = vsel %vm305, %v354, %v356
      %v360 = vadd.f32 %v358, %v359
      %361 = vadd.xlane.f32.xlu0 %v360
      %v362 = vpop.xlane.xlu0 %361
      %v363 = vmul.f32 %v358, %v358
      %v364 = vmul.f32 %v359, %v359
      %v365 = vadd.f32 %v363, %v364
      %366 = vadd.xlane.f32.xlu0 %v365
      %v367 = vpop.xlane.xlu0 %366
      %vm368 = vcmask 3072
      %v369 = vsel %vm368, %v362, 0.0
      %370 = vadd.xlane.f32.xlu0 %v369
      %v371 = vpop.xlane.xlu0 %370
      %v372 = vrot.slane %v371, 4
      %v373 = vadd.f32 %v371, %v372
      %v374 = vrot.slane %v373, 2
      %v375 = vadd.f32 %v373, %v374
      %v376 = vrot.slane %v375, 1
      %v377 = vadd.f32 %v375, %v376
      %s378 = vtos %v377
      %v379 = vsel %vm368, %v367, 0.0
      %380 = vadd.xlane.f32.xlu0 %v379
      %v381 = vpop.xlane.xlu0 %380
      %v382 = vrot.slane %v381, 4
      %v383 = vadd.f32 %v381, %v382
      %v384 = vrot.slane %v383, 2
      %v385 = vadd.f32 %v383, %v384
      %v386 = vrot.slane %v385, 1
      %v387 = vadd.f32 %v385, %v386
      %s388 = vtos %v387
      %s389 = smul.f32 %s378, 0.0009765625
      %s390 = smul.f32 %s388, 0.0009765625
      %s391 = smul.f32 %s389, %s389
      %s392 = ssub.f32 %s390, %s391
      %s393 = sadd.f32 %s392, 1e-05
      %v394 = vstv %s393
      %v395 = vrsqrt.pop %v394
      %v396 = vmul.f32 %v395, %v394
      %v397 = vmul.f32 %v396, %v395
      %v398 = vmul.f32 0.5, %v397
      %v399 = vsub.f32 1.5, %v398
      %v400 = vmul.f32 %v395, %v399
      %vm401 = vweird.f32 %v394
      %vm402 = vweird.f32 %v395
      %vm403 = vmor %vm401, %vm402
      %v404 = vsel %vm403, %v395, %v400
      %s405 = vtos %v404
      %vm406 = vcmp.ge.s32.totalorder %v243, 0
      %vm407 = vcmp.lt.s32.totalorder %v243, 4
      %vm408 = vmand %vm406, %vm407
      %v409 = vstv %s389
      %v410 = vsel %vm408, %v409, 0.0
      %v411 = vstv %s405
      %v412 = vsel %vm408, %v411, 0.0
      %v414 = vrot.slane %v362, 4
      %v416 = vsel %vm368, %v414, 0.0
      %417 = vadd.xlane.f32.xlu0 %v416
      %v418 = vpop.xlane.xlu0 %417
      %v419 = vrot.slane %v418, 4
      %v420 = vadd.f32 %v418, %v419
      %v421 = vrot.slane %v420, 2
      %v422 = vadd.f32 %v420, %v421
      %v423 = vrot.slane %v422, 1
      %v424 = vadd.f32 %v422, %v423
      %s425 = vtos %v424
      %v427 = vrot.slane %v367, 4
      %v429 = vsel %vm368, %v427, 0.0
      %430 = vadd.xlane.f32.xlu0 %v429
      %v431 = vpop.xlane.xlu0 %430
      %v432 = vrot.slane %v431, 4
      %v433 = vadd.f32 %v431, %v432
      %v434 = vrot.slane %v433, 2
      %v435 = vadd.f32 %v433, %v434
      %v436 = vrot.slane %v435, 1
      %v437 = vadd.f32 %v435, %v436
      %s438 = vtos %v437
      %s439 = smul.f32 %s425, 0.0009765625
      %s440 = smul.f32 %s438, 0.0009765625
      %s441 = smul.f32 %s439, %s439
      %s442 = ssub.f32 %s440, %s441
      %s443 = sadd.f32 %s442, 1e-05
      %v444 = vstv %s443
      %v445 = vrsqrt.pop %v444
      %v446 = vmul.f32 %v445, %v444
      %v447 = vmul.f32 %v446, %v445
      %v448 = vmul.f32 0.5, %v447
      %v449 = vsub.f32 1.5, %v448
      %v450 = vmul.f32 %v445, %v449
      %vm451 = vweird.f32 %v444
      %vm452 = vweird.f32 %v445
      %vm453 = vmor %vm451, %vm452
      %v454 = vsel %vm453, %v445, %v450
      %s455 = vtos %v454
      %vm456 = vcmp.ge.s32.totalorder %v243, 4
      %vm457 = vcmp.lt.s32.totalorder %v243, 8
      %vm458 = vmand %vm456, %vm457
      %v459 = vstv %s439
      %v460 = vsel %vm458, %v459, %v410
      %v461 = vstv %s455
      %v462 = vsel %vm458, %v461, %v412
      %v463 = vmul.f32 %v462, %v239
      %v464 = vmul.f32 %v460, %v463
      %v465 = vsub.f32 %v241, %v464
      %467 = vset.pattern.permute.xlu0 0
      %468 = vperm.xlu0 %467, %v463
      %v469 = vpop.permute.xlu0 %468
      %v471 = vmul.f32 %v358, %v469
      %v472 = vmul.f32 %v359, %v469
      %474 = vset.pattern.permute.xlu0 0
      %475 = vperm.xlu0 %474, %v465
      %v476 = vpop.permute.xlu0 %475
      %v478 = vadd.f32 %v471, %v476
      %v479 = vadd.f32 %v472, %v476
      %v480 = vmax.f32 %v478, 0.0
      %v481 = vmax.f32 %v479, 0.0
      %482 = vst [vmem:[%s237] sm:$0xff] %v480
      %483 = vst [vmem:[%s237 + $0x8] sm:$0xff] %v481
      %p484 = scmp.lt.s32.totalorder %s15, 1
      %s485 = scalar_select %p484, %s15, 1
      %s486 = smul.addr %s485, 2
      %s487 = smul.addr %s486, 8
      %s488 = scalar_lea.vmem %s4, %s487
      // Predicated region
      $region37: #{sconv_nr_gn_forward.1} parent=35 // pred_check
        %p489 = pneg %p132
      $region38: #{sconv_nr_gn_forward.1} parent=35 // pred_check_branch
        %491 = sbr.rel (%p489) target = $region40
      $region39: #{sconv_nr_gn_forward.1} parent=35 // pred_region
        _
      $region40: #{sconv_nr_gn_forward.1} parent=35 // pred_fallthru
        _
    $region36: #{sconv_nr_gn_forward.1} parent=5 // pred_fallthru
      _
    %p492 = scmp.le.s32.totalorder 2, %s10
    // Predicated region
    $region41: #{sconv_nr_gn_forward.1} parent=5 // pred_check
      %p493 = pneg %p492
    $region42: #{sconv_nr_gn_forward.1} parent=5 // pred_check_branch
      %495 = sbr.rel (%p493) target = $region44
    $region43: #{sconv_nr_gn_forward.1} parent=5 // pred_region
      %s496 = ssub.s32 %s10, 2
      // Predicated region
      $region45: #{sconv_nr_gn_forward.1} parent=43 // pred_check
        %p497 = pneg %p138
      $region46: #{sconv_nr_gn_forward.1} parent=43 // pred_check_branch
        %499 = sbr.rel (%p497) target = $region48
      $region47: #{sconv_nr_gn_forward.1} parent=43 // pred_region
        %p500 = scmp.lt.s32.totalorder %s16, 1
        %s501 = scalar_select %p500, %s16, 1
        %s502 = smul.addr %s501, 2
        %s503 = smul.addr %s502, 8
        %s504 = scalar_lea.vmem %s4, %s503
      $region48: #{sconv_nr_gn_forward.1} parent=43 // pred_fallthru
        _
    $region44: #{sconv_nr_gn_forward.1} parent=5 // pred_fallthru
      _
  $region6: #{sconv_nr_gn_forward.1} parent=0 // loop_footer
    %s14 = sadd.s32 1, %s10
  $region7: #{sconv_nr_gn_forward.1} parent=0 // loop_footer_branch
    %9 = sbr.rel target = $region3
  $region8: #{sconv_nr_gn_forward.1} parent=0 // loop_exit
    _

</llo_original>
